<compile_context>
chip_gen: v5e
topology: v5e:2x2
jax: 0.10.0
libtpu: 0.0.40
codegen_flags: <defaults>
</compile_context>

<pallas_src>
import functools
import random

import jax
import jax.numpy as jnp
from jax.experimental import pallas as pl
from jax.experimental.pallas import tpu as pltpu


# ---------------------------------------------------------------------------
# Kernel
# ---------------------------------------------------------------------------
def _mlp_kernel(x_ref, w_in_ref, b_in_ref, w_mid_ref, b_mid_ref,
                w_out_ref, b_out_ref, o_ref, *, n_mid, compute_dtype):
    # input_linear + clamp(min=0): bf16 operands, f32 accumulate/elementwise.
    h = jnp.dot(x_ref[...], w_in_ref[...], preferred_element_type=jnp.float32)
    h = jnp.maximum(h + b_in_ref[...], 0.0)

    # middle_linear applied n_mid times (shared weights), each with relu.
    # n_mid is static, so this unrolls into straight-line MXU ops.
    if n_mid > 0:
        # Hoist the (1,H)->(tn,H) broadcast: JAX does not CSE broadcast_in_dim,
        # so a per-iteration add of the (1,H) bias would re-emit the sublane
        # broadcast n_mid times.
        b_mid = jnp.broadcast_to(b_mid_ref[...], h.shape)
        for _ in range(n_mid):
            h = jnp.dot(h.astype(compute_dtype), w_mid_ref[...],
                        preferred_element_type=jnp.float32)
            h = jnp.maximum(h + b_mid, 0.0)

    # output_linear (no activation)
    y = jnp.dot(h.astype(compute_dtype), w_out_ref[...],
                preferred_element_type=jnp.float32)
    o_ref[...] = (y + b_out_ref[...]).astype(o_ref.dtype)


# ---------------------------------------------------------------------------
# Helpers
# ---------------------------------------------------------------------------
def _round_up(x, m):
    return (x + m - 1) // m * m


def _cdiv(a, b):
    return (a + b - 1) // b


def _pad_to(a, shape):
    return jnp.pad(a, [(0, s - d) for d, s in zip(a.shape, shape)])


def _nbytes(a):
    return a.size * jnp.dtype(a.dtype).itemsize


def _vmem_capacity_bytes():
    # Generation-aware VMEM capacity (128 MiB on v5e/v6e, 64 MiB/TC on v7x).
    try:
        return int(pltpu.get_tpu_info().vmem_capacity_bytes)
    except Exception:
        return 64 * 1024 * 1024  # conservative fallback (v7x per-TC)


def prepare_params(params, *, compute_dtype=jnp.bfloat16, lane=128):
    """Pad + cast weights/biases ONCE at init (hoisted out of the forward path).

    Zero-padding keeps padded lanes identically zero through bias+relu, so
    results are unchanged after slicing.  Returns (padded_params, dims).
    """
    # TODO(synk): on v6e/v7x with real H > 128, lane=256 better fills the 2x256^2
    # MXU; 128 is native for v5e and is what the toy shapes need.
    w_in, b_in, w_mid, b_mid, w_out, b_out = params
    D_in, H = w_in.shape
    D_out = w_out.shape[1]
    D_in_p, H_p, D_out_p = (_round_up(d, lane) for d in (D_in, H, D_out))
    padded = (
        _pad_to(w_in, (D_in_p, H_p)).astype(compute_dtype),
        _pad_to(b_in, (1, H_p)).astype(jnp.float32),
        _pad_to(w_mid, (H_p, H_p)).astype(compute_dtype),
        _pad_to(b_mid, (1, H_p)).astype(jnp.float32),
        _pad_to(w_out, (H_p, D_out_p)).astype(compute_dtype),
        _pad_to(b_out, (1, D_out_p)).astype(jnp.float32),
    )
    return padded, (D_in, H, D_out)


# ---------------------------------------------------------------------------
# Forward wrapper
# ---------------------------------------------------------------------------
def dynamic_net_forward(x, padded_params, dims, n_mid, *,
                        compute_dtype=jnp.bfloat16, block_n=512,
                        out_dtype=jnp.float32):
    """Pallas forward of DynamicNet with `n_mid` middle-layer repeats.

    NOTE: each distinct n_mid value (0..3) is a separate static specialization;
    pre-compile the 4 variants if the depth truly varies per call at runtime.
    """
    w_in_p, b_in_p, w_mid_p, b_mid_p, w_out_p, b_out_p = padded_params
    _, _, D_out = dims
    N = x.shape[0]
    D_in_p, H_p = w_in_p.shape
    D_out_p = w_out_p.shape[1]

    # Balanced batch tiling: bounds padding waste (no >tn-1 row overshoot) and
    # guarantees >=2 grid steps when N >= 16 so the "parallel" batch axis can
    # shard across v7x's two TensorCores (no-op on v5e/v6e).
    n_tiles = max(_cdiv(N, block_n), 2 if N >= 16 else 1)
    tn = _round_up(_cdiv(N, n_tiles), 8)
    N_p = _round_up(N, tn)
    grid = (N_p // tn,)

    # Only x is padded/cast per call; weights were prepared once at init.
    x_p = _pad_to(x, (N_p, D_in_p)).astype(compute_dtype)

    # Advisory cost estimate for XLA's scheduler.
    od_bytes = jnp.dtype(out_dtype).itemsize
    cd_bytes = jnp.dtype(compute_dtype).itemsize
    param_bytes = sum(_nbytes(a) for a in padded_params)
    flops = 2 * N_p * (D_in_p * H_p + n_mid * H_p * H_p + H_p * D_out_p)
    bytes_accessed = _nbytes(x_p) + param_bytes + N_p * D_out_p * od_bytes
    cost = pl.CostEstimate(flops=flops, transcendentals=0,
                           bytes_accessed=bytes_accessed)

    # VMEM budget: double-buffered x/out tiles + single-buffered resident
    # params (Buffered(1)) + f32 intermediates; capped at 0.8x physical VMEM
    # for Mosaic scratch headroom.
    vmem_est = (2 * tn * D_in_p * cd_bytes      # x tile, double-buffered
                + 2 * tn * D_out_p * od_bytes   # out tile, double-buffered
                + param_bytes                    # weights/biases, 1 buffer
                + 4 * tn * H_p * 4)              # f32 intermediate headroom
    cap = int(0.8 * _vmem_capacity_bytes())
    vmem_limit = int(min(max(2 * vmem_est, 16 * 1024 * 1024), cap))

    const_map = lambda i: (0, 0)
    # Constant index_map -> grid-resident; single-buffer to halve their VMEM.
    resident = functools.partial(pl.BlockSpec, index_map=const_map,
                                 pipeline_mode=pl.Buffered(1))
    kernel = functools.partial(_mlp_kernel, n_mid=n_mid,
                               compute_dtype=compute_dtype)

    y_p = pl.pallas_call(
        kernel,
        out_shape=jax.ShapeDtypeStruct((N_p, D_out_p), out_dtype),
        grid=grid,
        in_specs=[
            pl.BlockSpec((tn, D_in_p), lambda i: (i, 0)),   # x: tiled over N
            resident((D_in_p, H_p)),                        # w_in
            resident((1, H_p)),                             # b_in
            resident((H_p, H_p)),                           # w_mid
            resident((1, H_p)),                             # b_mid
            resident((H_p, D_out_p)),                       # w_out
            resident((1, D_out_p)),                         # b_out
        ],
        out_specs=pl.BlockSpec((tn, D_out_p), lambda i: (i, 0)),
        compiler_params=pltpu.CompilerParams(
            dimension_semantics=("parallel",),
            vmem_limit_bytes=vmem_limit),
        cost_estimate=cost,
    )(x_p, w_in_p, b_in_p, w_mid_p, b_mid_p, w_out_p, b_out_p)

    # Strip batch and lane padding.
    return y_p[:N, :D_out]


# ---------------------------------------------------------------------------
# Pure-JAX reference & init (torch.nn.Linear-style)
# ---------------------------------------------------------------------------
def _ref_forward(x, params, n_mid, compute_dtype):
    """Pure-JAX reference with the same bf16-operand / f32-accumulate recipe."""
    w_in, b_in, w_mid, b_mid, w_out, b_out = params
    cd = compute_dtype
    h = jnp.dot(x.astype(cd), w_in.astype(cd),
                preferred_element_type=jnp.float32)
    h = jnp.maximum(h + b_in, 0.0)
    for _ in range(n_mid):
        h = jnp.dot(h.astype(cd), w_mid.astype(cd),
                    preferred_element_type=jnp.float32)
        h = jnp.maximum(h + b_mid, 0.0)
    y = jnp.dot(h.astype(cd), w_out.astype(cd),
                preferred_element_type=jnp.float32)
    return y + b_out


def _init_linear(key, fan_in, fan_out):
    # Mimic torch.nn.Linear default init: U(-1/sqrt(fan_in), 1/sqrt(fan_in)).
    kw, kb = jax.random.split(key)
    bound = 1.0 / (fan_in ** 0.5)
    w = jax.random.uniform(kw, (fan_in, fan_out), jnp.float32, -bound, bound)
    b = jax.random.uniform(kb, (1, fan_out), jnp.float32, -bound, bound)
    return w, b


if __name__ == "__main__":
    # Small shapes consistent with the module: x is (N, D_in).
    N, D_in, H, D_out = 8, 16, 32, 8

    key = jax.random.PRNGKey(0)
    kx, k_in, k_mid, k_out = jax.random.split(key, 4)

    x = jax.random.normal(kx, (N, D_in), jnp.float32)
    w_in, b_in = _init_linear(k_in, D_in, H)
    w_mid, b_mid = _init_linear(k_mid, H, H)
    w_out, b_out = _init_linear(k_out, H, D_out)
    params = (w_in, b_in, w_mid, b_mid, w_out, b_out)

    # One-time pad/cast of parameters (hoisted out of the forward path).
    padded_params, dims = prepare_params(params)

    # DynamicNet picks random.randint(0, 3) middle repeats each forward;
    # choose it deterministically here (static for the compiled kernel).
    # TODO(synk): per-call random depth needs 4 pre-compiled specializations
    # (or a scalar-prefetch + fori_loop variant) rather than this static pick.
    random.seed(0)
    n_mid = random.randint(0, 3)

    y = dynamic_net_forward(x, padded_params, dims, n_mid)
    jax.block_until_ready(y)

    y_ref = _ref_forward(x, params, n_mid, jnp.bfloat16)
    assert y.shape == (N, D_out)
    assert jnp.allclose(y, y_ref, atol=2e-3, rtol=2e-3), (
        float(jnp.max(jnp.abs(y - y_ref))))

    print("KERNEL_OK")
</pallas_src>

<mosaic_0001>
module attributes {stable_mosaic.version = 11 : i64} {
  func.func @_mlp_kernel(%arg0: i32, %arg1: memref<8x128xbf16, #tpu.memory_space<vmem>>, %arg2: memref<128x128xbf16, #tpu.memory_space<vmem>>, %arg3: memref<1x128xf32, #tpu.memory_space<vmem>>, %arg4: memref<128x128xbf16, #tpu.memory_space<vmem>>, %arg5: memref<1x128xf32, #tpu.memory_space<vmem>>, %arg6: memref<128x128xbf16, #tpu.memory_space<vmem>>, %arg7: memref<1x128xf32, #tpu.memory_space<vmem>>, %arg8: memref<8x128xf32, #tpu.memory_space<vmem>>) attributes {dimension_semantics = [#tpu.dimension_semantics<parallel>], iteration_bounds = array<i64: 1>, scalar_prefetch = 0 : i64, scratch_operands = 0 : i64, tpu.core_type = #tpu.core_type<tc>, window_params = [{transform_indices = @transform_0, window_bounds = array<i64: 8, 128>}, {pipeline_mode = #tpu.pipeline_mode<synchronous>, transform_indices = @transform_1, window_bounds = array<i64: 128, 128>}, {pipeline_mode = #tpu.pipeline_mode<synchronous>, transform_indices = @transform_2, window_bounds = array<i64: 1, 128>}, {pipeline_mode = #tpu.pipeline_mode<synchronous>, transform_indices = @transform_3, window_bounds = array<i64: 128, 128>}, {pipeline_mode = #tpu.pipeline_mode<synchronous>, transform_indices = @transform_4, window_bounds = array<i64: 1, 128>}, {pipeline_mode = #tpu.pipeline_mode<synchronous>, transform_indices = @transform_5, window_bounds = array<i64: 128, 128>}, {pipeline_mode = #tpu.pipeline_mode<synchronous>, transform_indices = @transform_6, window_bounds = array<i64: 1, 128>}, {transform_indices = @transform_7, window_bounds = array<i64: 8, 128>}]} {
    %c0 = arith.constant 0 : index
    %c0_0 = arith.constant 0 : index
    %0 = vector.load %arg1[%c0, %c0_0] : memref<8x128xbf16, #tpu.memory_space<vmem>>, vector<8x128xbf16>
    %c0_1 = arith.constant 0 : index
    %c0_2 = arith.constant 0 : index
    %1 = vector.load %arg2[%c0_1, %c0_2] : memref<128x128xbf16, #tpu.memory_space<vmem>>, vector<128x128xbf16>
    %cst = arith.constant dense<0.000000e+00> : vector<8x128xf32>
    %2 = tpu.matmul %0, %1, %cst {dimension_numbers = #tpu.dot_dimension_numbers<[1], [0], [0], [1], [0, 0, 1, 1], [], []>} : vector<8x128xbf16>, vector<128x128xbf16>, vector<8x128xf32> -> vector<8x128xf32>
    %c0_3 = arith.constant 0 : index
    %c0_4 = arith.constant 0 : index
    %3 = vector.load %arg3[%c0_3, %c0_4] : memref<1x128xf32, #tpu.memory_space<vmem>>, vector<1x128xf32>
    %4 = vector.broadcast %3 : vector<1x128xf32> to vector<8x128xf32>
    %5 = arith.addf %2, %4 : vector<8x128xf32>
    %cst_5 = arith.constant 0.000000e+00 : f32
    %6 = vector.broadcast %cst_5 : f32 to vector<8x128xf32>
    %7 = arith.maximumf %5, %6 : vector<8x128xf32>
    %c0_6 = arith.constant 0 : index
    %c0_7 = arith.constant 0 : index
    %8 = vector.load %arg5[%c0_6, %c0_7] : memref<1x128xf32, #tpu.memory_space<vmem>>, vector<1x128xf32>
    %9 = vector.shape_cast %8 : vector<1x128xf32> to vector<1x128xf32>
    %10 = vector.broadcast %9 : vector<1x128xf32> to vector<8x128xf32>
    %11 = arith.truncf %7 : vector<8x128xf32> to vector<8x128xbf16>
    %c0_8 = arith.constant 0 : index
    %c0_9 = arith.constant 0 : index
    %12 = vector.load %arg4[%c0_8, %c0_9] : memref<128x128xbf16, #tpu.memory_space<vmem>>, vector<128x128xbf16>
    %cst_10 = arith.constant dense<0.000000e+00> : vector<8x128xf32>
    %13 = tpu.matmul %11, %12, %cst_10 {dimension_numbers = #tpu.dot_dimension_numbers<[1], [0], [0], [1], [0, 0, 1, 1], [], []>} : vector<8x128xbf16>, vector<128x128xbf16>, vector<8x128xf32> -> vector<8x128xf32>
    %14 = arith.addf %13, %10 : vector<8x128xf32>
    %cst_11 = arith.constant 0.000000e+00 : f32
    %15 = vector.broadcast %cst_11 : f32 to vector<8x128xf32>
    %16 = arith.maximumf %14, %15 : vector<8x128xf32>
    %17 = arith.truncf %16 : vector<8x128xf32> to vector<8x128xbf16>
    %c0_12 = arith.constant 0 : index
    %c0_13 = arith.constant 0 : index
    %18 = vector.load %arg4[%c0_12, %c0_13] : memref<128x128xbf16, #tpu.memory_space<vmem>>, vector<128x128xbf16>
    %cst_14 = arith.constant dense<0.000000e+00> : vector<8x128xf32>
    %19 = tpu.matmul %17, %18, %cst_14 {dimension_numbers = #tpu.dot_dimension_numbers<[1], [0], [0], [1], [0, 0, 1, 1], [], []>} : vector<8x128xbf16>, vector<128x128xbf16>, vector<8x128xf32> -> vector<8x128xf32>
    %20 = arith.addf %19, %10 : vector<8x128xf32>
    %cst_15 = arith.constant 0.000000e+00 : f32
    %21 = vector.broadcast %cst_15 : f32 to vector<8x128xf32>
    %22 = arith.maximumf %20, %21 : vector<8x128xf32>
    %23 = arith.truncf %22 : vector<8x128xf32> to vector<8x128xbf16>
    %c0_16 = arith.constant 0 : index
    %c0_17 = arith.constant 0 : index
    %24 = vector.load %arg4[%c0_16, %c0_17] : memref<128x128xbf16, #tpu.memory_space<vmem>>, vector<128x128xbf16>
    %cst_18 = arith.constant dense<0.000000e+00> : vector<8x128xf32>
    %25 = tpu.matmul %23, %24, %cst_18 {dimension_numbers = #tpu.dot_dimension_numbers<[1], [0], [0], [1], [0, 0, 1, 1], [], []>} : vector<8x128xbf16>, vector<128x128xbf16>, vector<8x128xf32> -> vector<8x128xf32>
    %26 = arith.addf %25, %10 : vector<8x128xf32>
    %cst_19 = arith.constant 0.000000e+00 : f32
    %27 = vector.broadcast %cst_19 : f32 to vector<8x128xf32>
    %28 = arith.maximumf %26, %27 : vector<8x128xf32>
    %29 = arith.truncf %28 : vector<8x128xf32> to vector<8x128xbf16>
    %c0_20 = arith.constant 0 : index
    %c0_21 = arith.constant 0 : index
    %30 = vector.load %arg6[%c0_20, %c0_21] : memref<128x128xbf16, #tpu.memory_space<vmem>>, vector<128x128xbf16>
    %cst_22 = arith.constant dense<0.000000e+00> : vector<8x128xf32>
    %31 = tpu.matmul %29, %30, %cst_22 {dimension_numbers = #tpu.dot_dimension_numbers<[1], [0], [0], [1], [0, 0, 1, 1], [], []>} : vector<8x128xbf16>, vector<128x128xbf16>, vector<8x128xf32> -> vector<8x128xf32>
    %c0_23 = arith.constant 0 : index
    %c0_24 = arith.constant 0 : index
    %32 = vector.load %arg7[%c0_23, %c0_24] : memref<1x128xf32, #tpu.memory_space<vmem>>, vector<1x128xf32>
    %33 = vector.broadcast %32 : vector<1x128xf32> to vector<8x128xf32>
    %34 = arith.addf %31, %33 : vector<8x128xf32>
    %c0_25 = arith.constant 0 : index
    %c0_26 = arith.constant 0 : index
    %35 = vector.load %arg8[%c0_25, %c0_26] : memref<8x128xf32, #tpu.memory_space<vmem>>, vector<8x128xf32>
    tpu.vector_store %arg8[%c0_25, %c0_26], %34 {strides = array<i32>} : memref<8x128xf32, #tpu.memory_space<vmem>>, vector<8x128xf32>,
    return
  }
  func.func @transform_0(%arg0: i32) -> (i32, i32) {
    %c0_i32 = arith.constant 0 : i32
    %c0_i32_0 = arith.constant 0 : i32
    return %arg0, %c0_i32 : i32, i32
  }
  func.func @transform_1(%arg0: i32) -> (i32, i32) {
    %c0_i32 = arith.constant 0 : i32
    %c0_i32_0 = arith.constant 0 : i32
    %c0_i32_1 = arith.constant 0 : i32
    return %c0_i32, %c0_i32_0 : i32, i32
  }
  func.func @transform_2(%arg0: i32) -> (i32, i32) {
    %c0_i32 = arith.constant 0 : i32
    %c0_i32_0 = arith.constant 0 : i32
    %c0_i32_1 = arith.constant 0 : i32
    return %c0_i32, %c0_i32_0 : i32, i32
  }
  func.func @transform_3(%arg0: i32) -> (i32, i32) {
    %c0_i32 = arith.constant 0 : i32
    %c0_i32_0 = arith.constant 0 : i32
    %c0_i32_1 = arith.constant 0 : i32
    return %c0_i32, %c0_i32_0 : i32, i32
  }
  func.func @transform_4(%arg0: i32) -> (i32, i32) {
    %c0_i32 = arith.constant 0 : i32
    %c0_i32_0 = arith.constant 0 : i32
    %c0_i32_1 = arith.constant 0 : i32
    return %c0_i32, %c0_i32_0 : i32, i32
  }
  func.func @transform_5(%arg0: i32) -> (i32, i32) {
    %c0_i32 = arith.constant 0 : i32
    %c0_i32_0 = arith.constant 0 : i32
    %c0_i32_1 = arith.constant 0 : i32
    return %c0_i32, %c0_i32_0 : i32, i32
  }
  func.func @transform_6(%arg0: i32) -> (i32, i32) {
    %c0_i32 = arith.constant 0 : i32
    %c0_i32_0 = arith.constant 0 : i32
    %c0_i32_1 = arith.constant 0 : i32
    return %c0_i32, %c0_i32_0 : i32, i32
  }
  func.func @transform_7(%arg0: i32) -> (i32, i32) {
    %c0_i32 = arith.constant 0 : i32
    %c0_i32_0 = arith.constant 0 : i32
    return %arg0, %c0_i32 : i32, i32
  }
}

</mosaic_0001>

<llo_original>
// kernel: tpu_custom_call.1
$region0: #{tpu_custom_call.1}
  #allocation0 [shape = 'u32[]', space=smem, size = 0x4, offset = 0x4, fixed_abs, tag = 'smem constant byte address 0x4 - core index']
  #allocation1 [shape = 'u32[72,128]{1,0:T(1,128)}', space=vmem, size = 0x9000, scoped, tag = 'internal scratch']
  %s0 = inlined_call_operand.hbm [shape: bf16[8,128], index: 0, kind: input, shape index: {}]
  %s1 = inlined_call_operand.hbm [shape: bf16[128,128], index: 1, kind: input, shape index: {}]
  %s2 = inlined_call_operand.vmem [shape: f32[1,128], index: 2, kind: input, shape index: {}]
  %s3 = inlined_call_operand.hbm [shape: bf16[128,128], index: 3, kind: input, shape index: {}]
  %s4 = inlined_call_operand.vmem [shape: f32[1,128], index: 4, kind: input, shape index: {}]
  %s5 = inlined_call_operand.hbm [shape: bf16[128,128], index: 5, kind: input, shape index: {}]
  %s6 = inlined_call_operand.vmem [shape: f32[1,128], index: 6, kind: input, shape index: {}]
  %s7 = inlined_call_operand.hbm [shape: f32[8,128], index: 7, kind: output, shape index: {}]
  %s8 = sld [smem:[#allocation0]]
  $region54: #{tpu_custom_call.1} parent=0
    _
  %s10 = ssub.s32 1, %s8
  %s11 = scalar_select 0, %s10, %s8
  $region1: #{tpu_custom_call.1} parent=0
    #allocation2 [shape = 'u8[2048]{0}', space=vmem, size = 0x800, scoped, tag = 'input window, operand 0, single buffered']
    #allocation3 [shape = 's32[1]{0}', space=sflag, size = 0x4, scoped, tag = 'scoped memory for tpu_custom_call.1']
    #allocation4 [shape = 's32[1]{0}', space=sflag, size = 0x4, scoped, tag = 'scoped memory for tpu_custom_call.1']
    #allocation5 [shape = 'u8[32768]{0}', space=vmem, size = 0x8000, scoped, tag = 'input window, operand 1, single buffered']
    #allocation6 [shape = 's32[1]{0}', space=sflag, size = 0x4, scoped, tag = 'scoped memory for tpu_custom_call.1']
    #allocation7 [shape = 'u8[32768]{0}', space=vmem, size = 0x8000, scoped, tag = 'input window, operand 3, single buffered']
    #allocation8 [shape = 'u8[32768]{0}', space=vmem, size = 0x8000, scoped, tag = 'input window, operand 5, single buffered']
    #allocation9 [shape = 's32[1]{0}', space=sflag, size = 0x4, scoped, tag = 'scoped memory for tpu_custom_call.1']
    #allocation10 [shape = 'u8[4096]{0}', space=vmem, size = 0x1000, scoped, tag = 'output window, operand 0, single buffered']
    %12 = vsyncpa [#allocation3], 0
    %13 = vsyncpa [#allocation6], 0
    %14 = vsyncpa [#allocation9], 0
    %15 = vsyncpa [#allocation4], 0
    // Predicated region
    $region2: #{tpu_custom_call.1} parent=1 // pred_check
      _
    $region3: #{tpu_custom_call.1} parent=1 // pred_check_branch
      %17 = sbr.rel (0) target = $region5
    $region4: #{tpu_custom_call.1} parent=1 // pred_region
      %19 = vsyncadd [#allocation3], 0
      %s21 = sshll.u32 %s0, 4
      %s22 = int_to_ptr.hbm [resolvable:$true] %s21
      %s23 = sshll.u32 [#allocation2], 4
      %s24 = int_to_ptr.vmem [resolvable:$true] %s23
      %26 = dma.hbm_to_vmem [thread:$0]  %s22, 64, %s24, [#allocation3]
    $region5: #{tpu_custom_call.1} parent=1 // pred_fallthru
      _
    // Predicated region
    $region6: #{tpu_custom_call.1} parent=1 // pred_check
      _
    $region7: #{tpu_custom_call.1} parent=1 // pred_check_branch
      %28 = sbr.rel (0) target = $region9
    $region8: #{tpu_custom_call.1} parent=1 // pred_region
      %30 = vsyncadd [#allocation6], 0
      %s31 = sshll.u32 %s1, 4
      %s32 = int_to_ptr.hbm [resolvable:$true] %s31
      %s33 = sshll.u32 [#allocation5], 4
      %s34 = int_to_ptr.vmem [resolvable:$true] %s33
      %39 = dma.hbm_to_vmem [thread:$0]  %s32, 1024, %s34, [#allocation6], 64, 64, 4
    $region9: #{tpu_custom_call.1} parent=1 // pred_fallthru
      _
    // Predicated region
    $region10: #{tpu_custom_call.1} parent=1 // pred_check
      _
    $region11: #{tpu_custom_call.1} parent=1 // pred_check_branch
      %41 = sbr.rel (0) target = $region13
    $region12: #{tpu_custom_call.1} parent=1 // pred_region
      _
    $region13: #{tpu_custom_call.1} parent=1 // pred_fallthru
      _
    // Predicated region
    $region14: #{tpu_custom_call.1} parent=1 // pred_check
      _
    $region15: #{tpu_custom_call.1} parent=1 // pred_check_branch
      %43 = sbr.rel (0) target = $region17
    $region16: #{tpu_custom_call.1} parent=1 // pred_region
      %45 = vsyncadd [#allocation6], 0
      %s46 = sshll.u32 %s3, 4
      %s47 = int_to_ptr.hbm [resolvable:$true] %s46
      %s48 = sshll.u32 [#allocation7], 4
      %s49 = int_to_ptr.vmem [resolvable:$true] %s48
      %54 = dma.hbm_to_vmem [thread:$0]  %s47, 1024, %s49, [#allocation6], 64, 64, 4
    $region17: #{tpu_custom_call.1} parent=1 // pred_fallthru
      _
    // Predicated region
    $region18: #{tpu_custom_call.1} parent=1 // pred_check
      _
    $region19: #{tpu_custom_call.1} parent=1 // pred_check_branch
      %56 = sbr.rel (0) target = $region21
    $region20: #{tpu_custom_call.1} parent=1 // pred_region
      _
    $region21: #{tpu_custom_call.1} parent=1 // pred_fallthru
      _
    // Predicated region
    $region22: #{tpu_custom_call.1} parent=1 // pred_check
      _
    $region23: #{tpu_custom_call.1} parent=1 // pred_check_branch
      %58 = sbr.rel (0) target = $region25
    $region24: #{tpu_custom_call.1} parent=1 // pred_region
      %60 = vsyncadd [#allocation9], 0
      %s61 = sshll.u32 %s5, 4
      %s62 = int_to_ptr.hbm [resolvable:$true] %s61
      %s63 = sshll.u32 [#allocation8], 4
      %s64 = int_to_ptr.vmem [resolvable:$true] %s63
      %69 = dma.hbm_to_vmem [thread:$0]  %s62, 1024, %s64, [#allocation9], 64, 64, 4
    $region25: #{tpu_custom_call.1} parent=1 // pred_fallthru
      _
    // Predicated region
    $region26: #{tpu_custom_call.1} parent=1 // pred_check
      _
    $region27: #{tpu_custom_call.1} parent=1 // pred_check_branch
      %71 = sbr.rel (0) target = $region29
    $region28: #{tpu_custom_call.1} parent=1 // pred_region
      _
    $region29: #{tpu_custom_call.1} parent=1 // pred_fallthru
      _
    // Predicated region
    $region30: #{tpu_custom_call.1} parent=1 // pred_check
      _
    $region31: #{tpu_custom_call.1} parent=1 // pred_check_branch
      %73 = sbr.rel (0) target = $region33
    $region32: #{tpu_custom_call.1} parent=1 // pred_region
      %75 = dma.done [#allocation3], 64
    $region33: #{tpu_custom_call.1} parent=1 // pred_fallthru
      _
    // Predicated region
    $region34: #{tpu_custom_call.1} parent=1 // pred_check
      _
    $region35: #{tpu_custom_call.1} parent=1 // pred_check_branch
      %77 = sbr.rel (0) target = $region37
    $region36: #{tpu_custom_call.1} parent=1 // pred_region
      %79 = dma.done [#allocation6], 1024
    $region37: #{tpu_custom_call.1} parent=1 // pred_fallthru
      _
    // Predicated region
    $region38: #{tpu_custom_call.1} parent=1 // pred_check
      _
    $region39: #{tpu_custom_call.1} parent=1 // pred_check_branch
      %81 = sbr.rel (0) target = $region41
    $region40: #{tpu_custom_call.1} parent=1 // pred_region
      %83 = dma.done [#allocation6], 1024
    $region41: #{tpu_custom_call.1} parent=1 // pred_fallthru
      _
    // Predicated region
    $region42: #{tpu_custom_call.1} parent=1 // pred_check
      _
    $region43: #{tpu_custom_call.1} parent=1 // pred_check_branch
      %85 = sbr.rel (0) target = $region45
    $region44: #{tpu_custom_call.1} parent=1 // pred_region
      %87 = dma.done [#allocation9], 1024
    $region45: #{tpu_custom_call.1} parent=1 // pred_fallthru
      _
    %v88 = vld [vmem:[#allocation2] sm:$0xf]
    %v89 = vld [vmem:[#allocation5] sm:$0xf]
    %v90 = vld [vmem:[#allocation5 + $0x4] sm:$0xf]
    %v91 = vld [vmem:[#allocation5 + $0x8] sm:$0xf]
    %v92 = vld [vmem:[#allocation5 + $0xc] sm:$0xf]
    %v93 = vld [vmem:[#allocation5 + $0x10] sm:$0xf]
    %v94 = vld [vmem:[#allocation5 + $0x14] sm:$0xf]
    %v95 = vld [vmem:[#allocation5 + $0x18] sm:$0xf]
    %v96 = vld [vmem:[#allocation5 + $0x1c] sm:$0xf]
    %v97 = vld [vmem:[#allocation5 + $0x20] sm:$0xf]
    %v98 = vld [vmem:[#allocation5 + $0x24] sm:$0xf]
    %v99 = vld [vmem:[#allocation5 + $0x28] sm:$0xf]
    %v100 = vld [vmem:[#allocation5 + $0x2c] sm:$0xf]
    %v101 = vld [vmem:[#allocation5 + $0x30] sm:$0xf]
    %v102 = vld [vmem:[#allocation5 + $0x34] sm:$0xf]
    %v103 = vld [vmem:[#allocation5 + $0x38] sm:$0xf]
    %v104 = vld [vmem:[#allocation5 + $0x3c] sm:$0xf]
    %v105 = vld [vmem:[%s2] sm:$0x1]
    %v107 = vperm.slane %v105, 0
    %v125 = vunpack.c.l.b16 %v89
    %v126 = vunpack.c.l.b16 %v90
    %v127 = vunpack.c.l.b16 %v91
    %v128 = vunpack.c.l.b16 %v92
    %v129 = vunpack.c.l.b16 %v93
    %v130 = vunpack.c.l.b16 %v94
    %v131 = vunpack.c.l.b16 %v95
    %v132 = vunpack.c.l.b16 %v96
    %v133 = vunpack.c.l.b16 %v97
    %v134 = vunpack.c.l.b16 %v98
    %v135 = vunpack.c.l.b16 %v99
    %v136 = vunpack.c.l.b16 %v100
    %v137 = vunpack.c.l.b16 %v101
    %v138 = vunpack.c.l.b16 %v102
    %v139 = vunpack.c.l.b16 %v103
    %v140 = vunpack.c.l.b16 %v104
    %v141 = vpack.c.b16 %v126, %v125
    %v142 = vpack.c.b16 %v128, %v127
    %v143 = vpack.c.b16 %v130, %v129
    %v144 = vpack.c.b16 %v132, %v131
    %v145 = vpack.c.b16 %v134, %v133
    %v146 = vpack.c.b16 %v136, %v135
    %v147 = vpack.c.b16 %v138, %v137
    %v148 = vpack.c.b16 %v140, %v139
    %157 = vmatpush.bf16.msra.mxu0 %v148
    %158 = vmatpush.bf16.msra.mxu0 %v147
    %159 = vmatpush.bf16.msra.mxu0 %v146
    %160 = vmatpush.bf16.msra.mxu0 %v145
    %161 = vmatpush.bf16.msra.mxu0 %v144
    %162 = vmatpush.bf16.msra.mxu0 %v143
    %163 = vmatpush.bf16.msra.mxu0 %v142
    %164 = vmatpush.bf16.msra.mxu0 %v141
    %165 = vmatmul.bf16.gmra.mxu0 %v88
    %v166 = vpop.f32.mrf.mxu0
    %v167 = vadd.f32 %v107, %v166
    %v168 = vpop.f32.mrf.mxu0
    %169 = vdwg.mxu0
    %v170 = vmax.f32 %v167, 0.0
    %v171 = vld [vmem:[%s4] sm:$0x1]
    %v173 = vperm.slane %v171, 0
    %v175 = vpack.c.bf16 %v170, %v170
    %v176 = vld [vmem:[#allocation7] sm:$0xf]
    %v177 = vld [vmem:[#allocation7 + $0x4] sm:$0xf]
    %v178 = vld [vmem:[#allocation7 + $0x8] sm:$0xf]
    %v179 = vld [vmem:[#allocation7 + $0xc] sm:$0xf]
    %v180 = vld [vmem:[#allocation7 + $0x10] sm:$0xf]
    %v181 = vld [vmem:[#allocation7 + $0x14] sm:$0xf]
    %v182 = vld [vmem:[#allocation7 + $0x18] sm:$0xf]
    %v183 = vld [vmem:[#allocation7 + $0x1c] sm:$0xf]
    %v184 = vld [vmem:[#allocation7 + $0x20] sm:$0xf]
    %v185 = vld [vmem:[#allocation7 + $0x24] sm:$0xf]
    %v186 = vld [vmem:[#allocation7 + $0x28] sm:$0xf]
    %v187 = vld [vmem:[#allocation7 + $0x2c] sm:$0xf]
    %v188 = vld [vmem:[#allocation7 + $0x30] sm:$0xf]
    %v189 = vld [vmem:[#allocation7 + $0x34] sm:$0xf]
    %v190 = vld [vmem:[#allocation7 + $0x38] sm:$0xf]
    %v191 = vld [vmem:[#allocation7 + $0x3c] sm:$0xf]
    %v208 = vunpack.c.l.b16 %v176
    %v209 = vunpack.c.l.b16 %v177
    %v210 = vunpack.c.l.b16 %v178
    %v211 = vunpack.c.l.b16 %v179
    %v212 = vunpack.c.l.b16 %v180
    %v213 = vunpack.c.l.b16 %v181
    %v214 = vunpack.c.l.b16 %v182
    %v215 = vunpack.c.l.b16 %v183
    %v216 = vunpack.c.l.b16 %v184
    %v217 = vunpack.c.l.b16 %v185
    %v218 = vunpack.c.l.b16 %v186
    %v219 = vunpack.c.l.b16 %v187
    %v220 = vunpack.c.l.b16 %v188
    %v221 = vunpack.c.l.b16 %v189
    %v222 = vunpack.c.l.b16 %v190
    %v223 = vunpack.c.l.b16 %v191
    %v224 = vpack.c.b16 %v209, %v208
    %v225 = vpack.c.b16 %v211, %v210
    %v226 = vpack.c.b16 %v213, %v212
    %v227 = vpack.c.b16 %v215, %v214
    %v228 = vpack.c.b16 %v217, %v216
    %v229 = vpack.c.b16 %v219, %v218
    %v230 = vpack.c.b16 %v221, %v220
    %v231 = vpack.c.b16 %v223, %v222
    %240 = vmatpush.bf16.msra.mxu0 %v231
    %241 = vmatpush.bf16.msra.mxu0 %v230
    %242 = vmatpush.bf16.msra.mxu0 %v229
    %243 = vmatpush.bf16.msra.mxu0 %v228
    %244 = vmatpush.bf16.msra.mxu0 %v227
    %245 = vmatpush.bf16.msra.mxu0 %v226
    %246 = vmatpush.bf16.msra.mxu0 %v225
    %247 = vmatpush.bf16.msra.mxu0 %v224
    %248 = vmatmul.bf16.gmra.mxu0 %v175
    %v249 = vpop.f32.mrf.mxu0
    %v250 = vadd.f32 %v173, %v249
    %v251 = vpop.f32.mrf.mxu0
    %252 = vdwg.mxu0
    %v253 = vmax.f32 %v250, 0.0
    %v254 = vpack.c.bf16 %v253, %v253
    %255 = vmatpush.bf16.msra.mxu0 %v231
    %256 = vmatpush.bf16.msra.mxu0 %v230
    %257 = vmatpush.bf16.msra.mxu0 %v229
    %258 = vmatpush.bf16.msra.mxu0 %v228
    %259 = vmatpush.bf16.msra.mxu0 %v227
    %260 = vmatpush.bf16.msra.mxu0 %v226
    %261 = vmatpush.bf16.msra.mxu0 %v225
    %262 = vmatpush.bf16.msra.mxu0 %v224
    %263 = vmatmul.bf16.gmra.mxu0 %v254
    %v264 = vpop.f32.mrf.mxu0
    %v265 = vadd.f32 %v173, %v264
    %v266 = vpop.f32.mrf.mxu0
    %267 = vdwg.mxu0
    %v268 = vmax.f32 %v265, 0.0
    %v269 = vpack.c.bf16 %v268, %v268
    %270 = vmatpush.bf16.msra.mxu0 %v231
    %271 = vmatpush.bf16.msra.mxu0 %v230
    %272 = vmatpush.bf16.msra.mxu0 %v229
    %273 = vmatpush.bf16.msra.mxu0 %v228
    %274 = vmatpush.bf16.msra.mxu0 %v227
    %275 = vmatpush.bf16.msra.mxu0 %v226
    %276 = vmatpush.bf16.msra.mxu0 %v225
    %277 = vmatpush.bf16.msra.mxu0 %v224
    %278 = vmatmul.bf16.gmra.mxu0 %v269
    %v279 = vpop.f32.mrf.mxu0
    %v280 = vadd.f32 %v173, %v279
    %v281 = vpop.f32.mrf.mxu0
    %282 = vdwg.mxu0
    %v283 = vmax.f32 %v280, 0.0
    %v284 = vpack.c.bf16 %v283, %v283
    %v285 = vld [vmem:[#allocation8] sm:$0xf]
    %v286 = vld [vmem:[#allocation8 + $0x4] sm:$0xf]
    %v287 = vld [vmem:[#allocation8 + $0x8] sm:$0xf]
    %v288 = vld [vmem:[#allocation8 + $0xc] sm:$0xf]
    %v289 = vld [vmem:[#allocation8 + $0x10] sm:$0xf]
    %v290 = vld [vmem:[#allocation8 + $0x14] sm:$0xf]
    %v291 = vld [vmem:[#allocation8 + $0x18] sm:$0xf]
    %v292 = vld [vmem:[#allocation8 + $0x1c] sm:$0xf]
    %v293 = vld [vmem:[#allocation8 + $0x20] sm:$0xf]
    %v294 = vld [vmem:[#allocation8 + $0x24] sm:$0xf]
    %v295 = vld [vmem:[#allocation8 + $0x28] sm:$0xf]
    %v296 = vld [vmem:[#allocation8 + $0x2c] sm:$0xf]
    %v297 = vld [vmem:[#allocation8 + $0x30] sm:$0xf]
    %v298 = vld [vmem:[#allocation8 + $0x34] sm:$0xf]
    %v299 = vld [vmem:[#allocation8 + $0x38] sm:$0xf]
    %v300 = vld [vmem:[#allocation8 + $0x3c] sm:$0xf]
    %v301 = vld [vmem:[%s6] sm:$0x1]
    %v303 = vperm.slane %v301, 0
    %v321 = vunpack.c.l.b16 %v285
    %v322 = vunpack.c.l.b16 %v286
    %v323 = vunpack.c.l.b16 %v287
    %v324 = vunpack.c.l.b16 %v288
    %v325 = vunpack.c.l.b16 %v289
    %v326 = vunpack.c.l.b16 %v290
    %v327 = vunpack.c.l.b16 %v291
    %v328 = vunpack.c.l.b16 %v292
    %v329 = vunpack.c.l.b16 %v293
    %v330 = vunpack.c.l.b16 %v294
    %v331 = vunpack.c.l.b16 %v295
    %v332 = vunpack.c.l.b16 %v296
    %v333 = vunpack.c.l.b16 %v297
    %v334 = vunpack.c.l.b16 %v298
    %v335 = vunpack.c.l.b16 %v299
    %v336 = vunpack.c.l.b16 %v300
    %v337 = vpack.c.b16 %v322, %v321
    %v338 = vpack.c.b16 %v324, %v323
    %v339 = vpack.c.b16 %v326, %v325
    %v340 = vpack.c.b16 %v328, %v327
    %v341 = vpack.c.b16 %v330, %v329
    %v342 = vpack.c.b16 %v332, %v331
    %v343 = vpack.c.b16 %v334, %v333
    %v344 = vpack.c.b16 %v336, %v335
    %353 = vmatpush.bf16.msra.mxu0 %v344
    %354 = vmatpush.bf16.msra.mxu0 %v343
    %355 = vmatpush.bf16.msra.mxu0 %v342
    %356 = vmatpush.bf16.msra.mxu0 %v341
    %357 = vmatpush.bf16.msra.mxu0 %v340
    %358 = vmatpush.bf16.msra.mxu0 %v339
    %359 = vmatpush.bf16.msra.mxu0 %v338
    %360 = vmatpush.bf16.msra.mxu0 %v337
    %361 = vmatmul.bf16.gmra.mxu0 %v284
    %v362 = vpop.f32.mrf.mxu0
    %v363 = vadd.f32 %v303, %v362
    %v364 = vpop.f32.mrf.mxu0
    %365 = vdwg.mxu0
    %366 = vst [vmem:[#allocation10] sm:$0xff] %v363
    // Predicated region
    $region46: #{tpu_custom_call.1} parent=1 // pred_check
      _
    $region47: #{tpu_custom_call.1} parent=1 // pred_check_branch
      %368 = sbr.rel (0) target = $region49
    $region48: #{tpu_custom_call.1} parent=1 // pred_region
      %370 = vsyncadd [#allocation4], 0
      %s372 = sshll.u32 [#allocation10], 4
      %s373 = int_to_ptr.vmem [resolvable:$true] %s372
      %s374 = sshll.u32 %s7, 4
      %s375 = int_to_ptr.hbm [resolvable:$true] %s374
      %377 = dma.vmem_to_hbm [thread:$0]  %s373, 128, %s375, [#allocation4]
    $region49: #{tpu_custom_call.1} parent=1 // pred_fallthru
      _
    // Predicated region
    $region50: #{tpu_custom_call.1} parent=1 // pred_check
      _
    $region51: #{tpu_custom_call.1} parent=1 // pred_check_branch
      %379 = sbr.rel (0) target = $region53
    $region52: #{tpu_custom_call.1} parent=1 // pred_region
      %381 = dma.done [#allocation4], 128
    $region53: #{tpu_custom_call.1} parent=1 // pred_fallthru
      _
    %382 = vsyncpa [#allocation3], 1
    %383 = vsyncpa [#allocation6], 1
    %384 = vsyncpa [#allocation9], 1
    %385 = vsyncpa [#allocation4], 1

</llo_original>
